<compile_context>
chip_gen: v7x
topology: tpu7x:2x2x1
jax: 0.10.0
libtpu: 0.0.40
codegen_flags: <defaults>
</compile_context>

<pallas_src>
import math

import jax
import jax.numpy as jnp
from jax.experimental import pallas as pl
from jax.experimental.pallas import tpu as pltpu


def _round_up(n, m):
    return ((n + m - 1) // m) * m


def _erf(z):
    # Abramowitz & Stegun 7.1.26 rational approximation (max abs err ~1.5e-7).
    a1, a2, a3, a4, a5 = 0.254829592, -0.284496736, 1.421413741, -1.453152027, 1.061405429
    p = 0.3275911
    s = jnp.where(z >= 0.0, 1.0, -1.0)
    az = jnp.abs(z)
    t = 1.0 / (1.0 + p * az)
    poly = ((((a5 * t + a4) * t + a3) * t + a2) * t + a1) * t
    return s * (1.0 - poly * jnp.exp(-az * az))


def _gelu(x):
    # Exact (erf-based) GELU -- matches torch.nn.functional.gelu default.
    return 0.5 * x * (1.0 + _erf(x * (1.0 / math.sqrt(2.0))))


def sparse_linear_kernel(x_ref, oe_ref, wb1_ref, wb2_ref,
                         w1b1_ref, w1b2_ref, w1p_ref, b1_ref,
                         w2_ref, b2_ref, w3_ref, b3_ref, out_ref):
    f32 = jnp.float32
    x3 = x_ref[...]                     # (TB, C, HW)
    oe3 = oe_ref[...]                   # (TB, C, HW)
    wb1 = wb1_ref[...][None, :, :]      # (1, C, HW)
    wb2 = wb2_ref[...][None, :, :]

    # WeightSumLayer: per-channel scale (VPU) + lane reduction (XLU) -> (TB, C)
    b1v = jnp.sum(oe3 * wb1, axis=-1)
    b2v = jnp.sum(oe3 * wb2, axis=-1)
    pv = jnp.sum(x3 * wb1, axis=-1)     # p1..p4 all use weightsumbox1 in the module

    # dense1 over the interleaved concat == b1v@W1_b1 + b2v@W1_b2 + pv@(sum of p slices)
    acc = b1_ref[...].astype(f32)
    acc = acc + jnp.dot(b1v, w1b1_ref[...].astype(f32), preferred_element_type=f32)
    acc = acc + jnp.dot(b2v, w1b2_ref[...].astype(f32), preferred_element_type=f32)
    acc = acc + jnp.dot(pv, w1p_ref[...].astype(f32), preferred_element_type=f32)
    h = _gelu(acc)

    h = _gelu(jnp.dot(h, w2_ref[...].astype(f32), preferred_element_type=f32)
              + b2_ref[...])
    o = jnp.dot(h, w3_ref[...].astype(f32), preferred_element_type=f32) + b3_ref[...]
    out_ref[...] = jax.nn.sigmoid(o)


def prepare_params(params, weights_dtype=jnp.float32):
    """One-time preprocessing: slice/fold W1, pad W3/b3 to a lane-dense width."""
    c, _hw = params["wbox1"].shape
    hidden = params["w2"].shape[0]
    nout = params["w3"].shape[1]
    nout_pad = _round_up(max(nout, 128), 128)

    w1r = params["w1"].reshape(c, 6, hidden)     # interleave order: [b1,b2,p,p,p,p]
    w1_b1 = w1r[:, 0, :]
    w1_b2 = w1r[:, 1, :]
    w1_p = w1r[:, 2:, :].sum(axis=1)

    w3p = jnp.zeros((hidden, nout_pad), jnp.float32).at[:, :nout].set(params["w3"])
    b3p = jnp.zeros((1, nout_pad), jnp.float32).at[:, :nout].set(params["b3"])

    cast = lambda a: a.astype(weights_dtype)
    return dict(
        wbox1=params["wbox1"].astype(jnp.float32),
        wbox2=params["wbox2"].astype(jnp.float32),
        w1_b1=cast(w1_b1), w1_b2=cast(w1_b2), w1_p=cast(w1_p),
        b1=params["b1"].astype(jnp.float32),
        w2=cast(params["w2"]), b2=params["b2"].astype(jnp.float32),
        w3=cast(w3p), b3=b3p,
        num_outputs=nout)


def sparse_linear_forward(x, objemb, prep):
    B, C, H, W = x.shape
    HW = H * W
    nout_pad = prep["w3"].shape[1]

    x3 = x.reshape(B, C, HW)            # same element order as torch .flatten(2)
    oe3 = objemb.reshape(B, C, HW)

    tb = 128 if B >= 128 else _round_up(B, 8)
    bp = _round_up(B, tb)
    if bp != B:
        pad = ((0, bp - B), (0, 0), (0, 0))
        x3 = jnp.pad(x3, pad)
        oe3 = jnp.pad(oe3, pad)

    batch_spec = pl.BlockSpec((tb, C, HW), lambda i: (i, 0, 0))
    w_spec = lambda a: pl.BlockSpec(a.shape, lambda i: (0, 0))  # resident weights

    out = pl.pallas_call(
        sparse_linear_kernel,
        out_shape=jax.ShapeDtypeStruct((bp, nout_pad), jnp.float32),
        grid_spec=pltpu.PrefetchScalarGridSpec(
            num_scalar_prefetch=0,
            grid=(bp // tb,),
            in_specs=[batch_spec, batch_spec,
                      w_spec(prep["wbox1"]), w_spec(prep["wbox2"]),
                      w_spec(prep["w1_b1"]), w_spec(prep["w1_b2"]),
                      w_spec(prep["w1_p"]), w_spec(prep["b1"]),
                      w_spec(prep["w2"]), w_spec(prep["b2"]),
                      w_spec(prep["w3"]), w_spec(prep["b3"])],
            out_specs=pl.BlockSpec((tb, nout_pad), lambda i: (i, 0))),
        compiler_params=pltpu.CompilerParams(
            dimension_semantics=("parallel",)),
    )(x3, oe3, prep["wbox1"], prep["wbox2"],
      prep["w1_b1"], prep["w1_b2"], prep["w1_p"],
      prep["b1"], prep["w2"], prep["b2"], prep["w3"], prep["b3"])

    return out[:B, :prep["num_outputs"]]


def init_params(key, c, h, w, num_outputs=4, hidden_dim=256):
    """Deterministic PyTorch-style init (Linear: U(+/-1/sqrt(fan_in));
    WeightSumLayer: U(+/-1/sqrt(l_vec)) with l_vec = c, as in the module)."""
    hw = h * w

    def linear(k, fan_in, fan_out):
        kw, kb = jax.random.split(k)
        bound = 1.0 / math.sqrt(fan_in)
        wt = jax.random.uniform(kw, (fan_in, fan_out), jnp.float32, -bound, bound)
        b = jax.random.uniform(kb, (1, fan_out), jnp.float32, -bound, bound)
        return wt, b

    def weightsum(k):
        bound = 1.0 / math.sqrt(c)
        return jax.random.uniform(k, (c, hw), jnp.float32, -bound, bound)

    ks = jax.random.split(key, 5)
    wbox1 = weightsum(ks[0])
    wbox2 = weightsum(ks[1])
    w1, b1 = linear(ks[2], 6 * c, hidden_dim)
    w2, b2 = linear(ks[3], hidden_dim, hidden_dim)
    w3, b3 = linear(ks[4], hidden_dim, num_outputs)
    return dict(wbox1=wbox1, wbox2=wbox2, w1=w1, b1=b1,
                w2=w2, b2=b2, w3=w3, b3=b3)


def reference_forward(x, objemb, params):
    """Pure-JAX reference mirroring the PyTorch module literally."""
    B, C, H, W = x.shape
    oe = objemb.reshape(B, C, H * W)
    xf = x.reshape(B, C, H * W)
    b1 = jnp.sum(oe * params["wbox1"], axis=2)
    b2 = jnp.sum(oe * params["wbox2"], axis=2)
    p1 = jnp.sum(xf * params["wbox1"], axis=2)   # module uses weightsumbox1 for p1..p4
    cat = jnp.stack([b1, b2, p1, p1, p1, p1], axis=2).reshape(B, 6 * C)
    h = _gelu(cat @ params["w1"] + params["b1"])
    h = _gelu(h @ params["w2"] + params["b2"])
    return jax.nn.sigmoid(h @ params["w3"] + params["b3"])


if __name__ == "__main__":
    B, C, H, W = 2, 4, 16, 16
    key = jax.random.PRNGKey(0)
    kx, ke, kp = jax.random.split(key, 3)
    x = jax.random.normal(kx, (B, C, H, W), jnp.float32)
    objemb = jax.random.normal(ke, (B, C, H, W), jnp.float32)
    params = init_params(kp, C, H, W, num_outputs=4)

    prepared = prepare_params(params)          # one-time weight preprocessing
    out = sparse_linear_forward(x, objemb, prepared)
    out = jax.block_until_ready(out)

    ref = reference_forward(x, objemb, params)
    assert out.shape == (B, 4), out.shape
    assert jnp.allclose(out, ref, atol=2e-5, rtol=2e-5), (out, ref)
    print("KERNEL_OK")
</pallas_src>

<mosaic_0001>
module attributes {stable_mosaic.version = 11 : i64} {
  func.func @sparse_linear_kernel(%arg0: i32, %arg1: memref<8x4x256xf32, #tpu.memory_space<vmem>>, %arg2: memref<8x4x256xf32, #tpu.memory_space<vmem>>, %arg3: memref<4x256xf32, #tpu.memory_space<vmem>>, %arg4: memref<4x256xf32, #tpu.memory_space<vmem>>, %arg5: memref<4x256xf32, #tpu.memory_space<vmem>>, %arg6: memref<4x256xf32, #tpu.memory_space<vmem>>, %arg7: memref<4x256xf32, #tpu.memory_space<vmem>>, %arg8: memref<1x256xf32, #tpu.memory_space<vmem>>, %arg9: memref<256x256xf32, #tpu.memory_space<vmem>>, %arg10: memref<1x256xf32, #tpu.memory_space<vmem>>, %arg11: memref<256x128xf32, #tpu.memory_space<vmem>>, %arg12: memref<1x128xf32, #tpu.memory_space<vmem>>, %arg13: memref<8x128xf32, #tpu.memory_space<vmem>>) attributes {dimension_semantics = [#tpu.dimension_semantics<parallel>], iteration_bounds = array<i64: 1>, scalar_prefetch = 0 : i64, scratch_operands = 0 : i64, tpu.core_type = #tpu.core_type<tc>, window_params = [{transform_indices = @transform_0, window_bounds = array<i64: 8, 4, 256>}, {transform_indices = @transform_1, window_bounds = array<i64: 8, 4, 256>}, {pipeline_mode = #tpu.pipeline_mode<synchronous>, transform_indices = @transform_2, window_bounds = array<i64: 4, 256>}, {pipeline_mode = #tpu.pipeline_mode<synchronous>, transform_indices = @transform_3, window_bounds = array<i64: 4, 256>}, {pipeline_mode = #tpu.pipeline_mode<synchronous>, transform_indices = @transform_4, window_bounds = array<i64: 4, 256>}, {pipeline_mode = #tpu.pipeline_mode<synchronous>, transform_indices = @transform_5, window_bounds = array<i64: 4, 256>}, {pipeline_mode = #tpu.pipeline_mode<synchronous>, transform_indices = @transform_6, window_bounds = array<i64: 4, 256>}, {pipeline_mode = #tpu.pipeline_mode<synchronous>, transform_indices = @transform_7, window_bounds = array<i64: 1, 256>}, {pipeline_mode = #tpu.pipeline_mode<synchronous>, transform_indices = @transform_8, window_bounds = array<i64: 256, 256>}, {pipeline_mode = #tpu.pipeline_mode<synchronous>, transform_indices = @transform_9, window_bounds = array<i64: 1, 256>}, {pipeline_mode = #tpu.pipeline_mode<synchronous>, transform_indices = @transform_10, window_bounds = array<i64: 256, 128>}, {pipeline_mode = #tpu.pipeline_mode<synchronous>, transform_indices = @transform_11, window_bounds = array<i64: 1, 128>}, {transform_indices = @transform_12, window_bounds = array<i64: 8, 128>}]} {
    %c0 = arith.constant 0 : index
    %c0_0 = arith.constant 0 : index
    %c0_1 = arith.constant 0 : index
    %0 = vector.load %arg1[%c0, %c0_0, %c0_1] : memref<8x4x256xf32, #tpu.memory_space<vmem>>, vector<8x4x256xf32>
    %c0_2 = arith.constant 0 : index
    %c0_3 = arith.constant 0 : index
    %c0_4 = arith.constant 0 : index
    %1 = vector.load %arg2[%c0_2, %c0_3, %c0_4] : memref<8x4x256xf32, #tpu.memory_space<vmem>>, vector<8x4x256xf32>
    %c0_5 = arith.constant 0 : index
    %c0_6 = arith.constant 0 : index
    %2 = vector.load %arg3[%c0_5, %c0_6] : memref<4x256xf32, #tpu.memory_space<vmem>>, vector<4x256xf32>
    %3 = vector.shape_cast %2 : vector<4x256xf32> to vector<1x4x256xf32>
    %c0_7 = arith.constant 0 : index
    %c0_8 = arith.constant 0 : index
    %4 = vector.load %arg4[%c0_7, %c0_8] : memref<4x256xf32, #tpu.memory_space<vmem>>, vector<4x256xf32>
    %5 = vector.shape_cast %4 : vector<4x256xf32> to vector<1x4x256xf32>
    %6 = vector.broadcast %3 : vector<1x4x256xf32> to vector<8x4x256xf32>
    %7 = arith.mulf %1, %6 : vector<8x4x256xf32>
    %cst = arith.constant dense<0.000000e+00> : vector<8x4xf32>
    %8 = vector.multi_reduction <add>, %7, %cst [2] : vector<8x4x256xf32> to vector<8x4xf32>
    %9 = vector.broadcast %5 : vector<1x4x256xf32> to vector<8x4x256xf32>
    %10 = arith.mulf %1, %9 : vector<8x4x256xf32>
    %cst_9 = arith.constant dense<0.000000e+00> : vector<8x4xf32>
    %11 = vector.multi_reduction <add>, %10, %cst_9 [2] : vector<8x4x256xf32> to vector<8x4xf32>
    %12 = vector.broadcast %3 : vector<1x4x256xf32> to vector<8x4x256xf32>
    %13 = arith.mulf %0, %12 : vector<8x4x256xf32>
    %cst_10 = arith.constant dense<0.000000e+00> : vector<8x4xf32>
    %14 = vector.multi_reduction <add>, %13, %cst_10 [2] : vector<8x4x256xf32> to vector<8x4xf32>
    %c0_11 = arith.constant 0 : index
    %c0_12 = arith.constant 0 : index
    %15 = vector.load %arg8[%c0_11, %c0_12] : memref<1x256xf32, #tpu.memory_space<vmem>>, vector<1x256xf32>
    %c0_13 = arith.constant 0 : index
    %c0_14 = arith.constant 0 : index
    %16 = vector.load %arg5[%c0_13, %c0_14] : memref<4x256xf32, #tpu.memory_space<vmem>>, vector<4x256xf32>
    %cst_15 = arith.constant dense<0.000000e+00> : vector<8x256xf32>
    %17 = tpu.matmul %8, %16, %cst_15 {dimension_numbers = #tpu.dot_dimension_numbers<[1], [0], [0], [1], [0, 0, 1, 1], [], []>} : vector<8x4xf32>, vector<4x256xf32>, vector<8x256xf32> -> vector<8x256xf32>
    %18 = vector.broadcast %15 : vector<1x256xf32> to vector<8x256xf32>
    %19 = arith.addf %18, %17 : vector<8x256xf32>
    %c0_16 = arith.constant 0 : index
    %c0_17 = arith.constant 0 : index
    %20 = vector.load %arg6[%c0_16, %c0_17] : memref<4x256xf32, #tpu.memory_space<vmem>>, vector<4x256xf32>
    %cst_18 = arith.constant dense<0.000000e+00> : vector<8x256xf32>
    %21 = tpu.matmul %11, %20, %cst_18 {dimension_numbers = #tpu.dot_dimension_numbers<[1], [0], [0], [1], [0, 0, 1, 1], [], []>} : vector<8x4xf32>, vector<4x256xf32>, vector<8x256xf32> -> vector<8x256xf32>
    %22 = arith.addf %19, %21 : vector<8x256xf32>
    %c0_19 = arith.constant 0 : index
    %c0_20 = arith.constant 0 : index
    %23 = vector.load %arg7[%c0_19, %c0_20] : memref<4x256xf32, #tpu.memory_space<vmem>>, vector<4x256xf32>
    %cst_21 = arith.constant dense<0.000000e+00> : vector<8x256xf32>
    %24 = tpu.matmul %14, %23, %cst_21 {dimension_numbers = #tpu.dot_dimension_numbers<[1], [0], [0], [1], [0, 0, 1, 1], [], []>} : vector<8x4xf32>, vector<4x256xf32>, vector<8x256xf32> -> vector<8x256xf32>
    %25 = arith.addf %22, %24 : vector<8x256xf32>
    %cst_22 = arith.constant 5.000000e-01 : f32
    %26 = vector.broadcast %cst_22 : f32 to vector<8x256xf32>
    %27 = arith.mulf %26, %25 : vector<8x256xf32>
    %cst_23 = arith.constant 0.707106769 : f32
    %28 = vector.broadcast %cst_23 : f32 to vector<8x256xf32>
    %29 = arith.mulf %25, %28 : vector<8x256xf32>
    %cst_24 = arith.constant 0.000000e+00 : f32
    %30 = vector.broadcast %cst_24 : f32 to vector<8x256xf32>
    %31 = arith.cmpf oge, %29, %30 : vector<8x256xf32>
    %cst_25 = arith.constant 1.000000e+00 : f32
    %cst_26 = arith.constant -1.000000e+00 : f32
    %32 = vector.broadcast %cst_25 : f32 to vector<8x256xf32>
    %33 = vector.broadcast %cst_26 : f32 to vector<8x256xf32>
    %34 = arith.select %31, %32, %33 : vector<8x256xi1>, vector<8x256xf32>
    %35 = math.absf %29 : vector<8x256xf32>
    %cst_27 = arith.constant 0.327591091 : f32
    %36 = vector.broadcast %cst_27 : f32 to vector<8x256xf32>
    %37 = arith.mulf %36, %35 : vector<8x256xf32>
    %cst_28 = arith.constant 1.000000e+00 : f32
    %38 = vector.broadcast %cst_28 : f32 to vector<8x256xf32>
    %39 = arith.addf %38, %37 : vector<8x256xf32>
    %cst_29 = arith.constant 1.000000e+00 : f32
    %40 = vector.broadcast %cst_29 : f32 to vector<8x256xf32>
    %41 = arith.divf %40, %39 : vector<8x256xf32>
    %cst_30 = arith.constant 1.06140542 : f32
    %42 = vector.broadcast %cst_30 : f32 to vector<8x256xf32>
    %43 = arith.mulf %42, %41 : vector<8x256xf32>
    %cst_31 = arith.constant -1.45315206 : f32
    %44 = vector.broadcast %cst_31 : f32 to vector<8x256xf32>
    %45 = arith.addf %43, %44 : vector<8x256xf32>
    %46 = arith.mulf %45, %41 : vector<8x256xf32>
    %cst_32 = arith.constant 1.42141378 : f32
    %47 = vector.broadcast %cst_32 : f32 to vector<8x256xf32>
    %48 = arith.addf %46, %47 : vector<8x256xf32>
    %49 = arith.mulf %48, %41 : vector<8x256xf32>
    %cst_33 = arith.constant -0.284496725 : f32
    %50 = vector.broadcast %cst_33 : f32 to vector<8x256xf32>
    %51 = arith.addf %49, %50 : vector<8x256xf32>
    %52 = arith.mulf %51, %41 : vector<8x256xf32>
    %cst_34 = arith.constant 0.254829586 : f32
    %53 = vector.broadcast %cst_34 : f32 to vector<8x256xf32>
    %54 = arith.addf %52, %53 : vector<8x256xf32>
    %55 = arith.mulf %54, %41 : vector<8x256xf32>
    %cst_35 = arith.constant 0.000000e+00 : f32
    %56 = vector.broadcast %cst_35 : f32 to vector<8x256xf32>
    %57 = arith.subf %56, %35 : vector<8x256xf32>
    %58 = arith.mulf %57, %35 : vector<8x256xf32>
    %59 = math.exp %58 : vector<8x256xf32>
    %60 = arith.mulf %55, %59 : vector<8x256xf32>
    %cst_36 = arith.constant 1.000000e+00 : f32
    %61 = vector.broadcast %cst_36 : f32 to vector<8x256xf32>
    %62 = arith.subf %61, %60 : vector<8x256xf32>
    %63 = arith.mulf %34, %62 : vector<8x256xf32>
    %cst_37 = arith.constant 1.000000e+00 : f32
    %64 = vector.broadcast %cst_37 : f32 to vector<8x256xf32>
    %65 = arith.addf %64, %63 : vector<8x256xf32>
    %66 = arith.mulf %27, %65 : vector<8x256xf32>
    %c0_38 = arith.constant 0 : index
    %c0_39 = arith.constant 0 : index
    %67 = vector.load %arg9[%c0_38, %c0_39] : memref<256x256xf32, #tpu.memory_space<vmem>>, vector<256x256xf32>
    %cst_40 = arith.constant dense<0.000000e+00> : vector<8x256xf32>
    %68 = tpu.matmul %66, %67, %cst_40 {dimension_numbers = #tpu.dot_dimension_numbers<[1], [0], [0], [1], [0, 0, 1, 1], [], []>} : vector<8x256xf32>, vector<256x256xf32>, vector<8x256xf32> -> vector<8x256xf32>
    %c0_41 = arith.constant 0 : index
    %c0_42 = arith.constant 0 : index
    %69 = vector.load %arg10[%c0_41, %c0_42] : memref<1x256xf32, #tpu.memory_space<vmem>>, vector<1x256xf32>
    %70 = vector.broadcast %69 : vector<1x256xf32> to vector<8x256xf32>
    %71 = arith.addf %68, %70 : vector<8x256xf32>
    %cst_43 = arith.constant 5.000000e-01 : f32
    %72 = vector.broadcast %cst_43 : f32 to vector<8x256xf32>
    %73 = arith.mulf %72, %71 : vector<8x256xf32>
    %cst_44 = arith.constant 0.707106769 : f32
    %74 = vector.broadcast %cst_44 : f32 to vector<8x256xf32>
    %75 = arith.mulf %71, %74 : vector<8x256xf32>
    %cst_45 = arith.constant 0.000000e+00 : f32
    %76 = vector.broadcast %cst_45 : f32 to vector<8x256xf32>
    %77 = arith.cmpf oge, %75, %76 : vector<8x256xf32>
    %cst_46 = arith.constant 1.000000e+00 : f32
    %cst_47 = arith.constant -1.000000e+00 : f32
    %78 = vector.broadcast %cst_46 : f32 to vector<8x256xf32>
    %79 = vector.broadcast %cst_47 : f32 to vector<8x256xf32>
    %80 = arith.select %77, %78, %79 : vector<8x256xi1>, vector<8x256xf32>
    %81 = math.absf %75 : vector<8x256xf32>
    %cst_48 = arith.constant 0.327591091 : f32
    %82 = vector.broadcast %cst_48 : f32 to vector<8x256xf32>
    %83 = arith.mulf %82, %81 : vector<8x256xf32>
    %cst_49 = arith.constant 1.000000e+00 : f32
    %84 = vector.broadcast %cst_49 : f32 to vector<8x256xf32>
    %85 = arith.addf %84, %83 : vector<8x256xf32>
    %cst_50 = arith.constant 1.000000e+00 : f32
    %86 = vector.broadcast %cst_50 : f32 to vector<8x256xf32>
    %87 = arith.divf %86, %85 : vector<8x256xf32>
    %cst_51 = arith.constant 1.06140542 : f32
    %88 = vector.broadcast %cst_51 : f32 to vector<8x256xf32>
    %89 = arith.mulf %88, %87 : vector<8x256xf32>
    %cst_52 = arith.constant -1.45315206 : f32
    %90 = vector.broadcast %cst_52 : f32 to vector<8x256xf32>
    %91 = arith.addf %89, %90 : vector<8x256xf32>
    %92 = arith.mulf %91, %87 : vector<8x256xf32>
    %cst_53 = arith.constant 1.42141378 : f32
    %93 = vector.broadcast %cst_53 : f32 to vector<8x256xf32>
    %94 = arith.addf %92, %93 : vector<8x256xf32>
    %95 = arith.mulf %94, %87 : vector<8x256xf32>
    %cst_54 = arith.constant -0.284496725 : f32
    %96 = vector.broadcast %cst_54 : f32 to vector<8x256xf32>
    %97 = arith.addf %95, %96 : vector<8x256xf32>
    %98 = arith.mulf %97, %87 : vector<8x256xf32>
    %cst_55 = arith.constant 0.254829586 : f32
    %99 = vector.broadcast %cst_55 : f32 to vector<8x256xf32>
    %100 = arith.addf %98, %99 : vector<8x256xf32>
    %101 = arith.mulf %100, %87 : vector<8x256xf32>
    %cst_56 = arith.constant 0.000000e+00 : f32
    %102 = vector.broadcast %cst_56 : f32 to vector<8x256xf32>
    %103 = arith.subf %102, %81 : vector<8x256xf32>
    %104 = arith.mulf %103, %81 : vector<8x256xf32>
    %105 = math.exp %104 : vector<8x256xf32>
    %106 = arith.mulf %101, %105 : vector<8x256xf32>
    %cst_57 = arith.constant 1.000000e+00 : f32
    %107 = vector.broadcast %cst_57 : f32 to vector<8x256xf32>
    %108 = arith.subf %107, %106 : vector<8x256xf32>
    %109 = arith.mulf %80, %108 : vector<8x256xf32>
    %cst_58 = arith.constant 1.000000e+00 : f32
    %110 = vector.broadcast %cst_58 : f32 to vector<8x256xf32>
    %111 = arith.addf %110, %109 : vector<8x256xf32>
    %112 = arith.mulf %73, %111 : vector<8x256xf32>
    %c0_59 = arith.constant 0 : index
    %c0_60 = arith.constant 0 : index
    %113 = vector.load %arg11[%c0_59, %c0_60] : memref<256x128xf32, #tpu.memory_space<vmem>>, vector<256x128xf32>
    %cst_61 = arith.constant dense<0.000000e+00> : vector<8x128xf32>
    %114 = tpu.matmul %112, %113, %cst_61 {dimension_numbers = #tpu.dot_dimension_numbers<[1], [0], [0], [1], [0, 0, 1, 1], [], []>} : vector<8x256xf32>, vector<256x128xf32>, vector<8x128xf32> -> vector<8x128xf32>
    %c0_62 = arith.constant 0 : index
    %c0_63 = arith.constant 0 : index
    %115 = vector.load %arg12[%c0_62, %c0_63] : memref<1x128xf32, #tpu.memory_space<vmem>>, vector<1x128xf32>
    %116 = vector.broadcast %115 : vector<1x128xf32> to vector<8x128xf32>
    %117 = arith.addf %114, %116 : vector<8x128xf32>
    %118 = arith.negf %117 : vector<8x128xf32>
    %119 = math.exp %118 : vector<8x128xf32>
    %cst_64 = arith.constant 1.000000e+00 : f32
    %120 = vector.broadcast %cst_64 : f32 to vector<8x128xf32>
    %121 = arith.addf %120, %119 : vector<8x128xf32>
    %122 = arith.divf %120, %121 : vector<8x128xf32>
    %c0_65 = arith.constant 0 : index
    %c0_66 = arith.constant 0 : index
    %123 = vector.load %arg13[%c0_65, %c0_66] : memref<8x128xf32, #tpu.memory_space<vmem>>, vector<8x128xf32>
    tpu.vector_store %arg13[%c0_65, %c0_66], %122 {strides = array<i32>} : memref<8x128xf32, #tpu.memory_space<vmem>>, vector<8x128xf32>,
    return
  }
  func.func @transform_0(%arg0: i32) -> (i32, i32, i32) {
    %c0_i32 = arith.constant 0 : i32
    %c0_i32_0 = arith.constant 0 : i32
    %c0_i32_1 = arith.constant 0 : i32
    return %arg0, %c0_i32, %c0_i32_0 : i32, i32, i32
  }
  func.func @transform_1(%arg0: i32) -> (i32, i32, i32) {
    %c0_i32 = arith.constant 0 : i32
    %c0_i32_0 = arith.constant 0 : i32
    %c0_i32_1 = arith.constant 0 : i32
    return %arg0, %c0_i32, %c0_i32_0 : i32, i32, i32
  }
  func.func @transform_2(%arg0: i32) -> (i32, i32) {
    %c0_i32 = arith.constant 0 : i32
    %c0_i32_0 = arith.constant 0 : i32
    %c0_i32_1 = arith.constant 0 : i32
    return %c0_i32, %c0_i32_0 : i32, i32
  }
  func.func @transform_3(%arg0: i32) -> (i32, i32) {
    %c0_i32 = arith.constant 0 : i32
    %c0_i32_0 = arith.constant 0 : i32
    %c0_i32_1 = arith.constant 0 : i32
    return %c0_i32, %c0_i32_0 : i32, i32
  }
  func.func @transform_4(%arg0: i32) -> (i32, i32) {
    %c0_i32 = arith.constant 0 : i32
    %c0_i32_0 = arith.constant 0 : i32
    %c0_i32_1 = arith.constant 0 : i32
    return %c0_i32, %c0_i32_0 : i32, i32
  }
  func.func @transform_5(%arg0: i32) -> (i32, i32) {
    %c0_i32 = arith.constant 0 : i32
    %c0_i32_0 = arith.constant 0 : i32
    %c0_i32_1 = arith.constant 0 : i32
    return %c0_i32, %c0_i32_0 : i32, i32
  }
  func.func @transform_6(%arg0: i32) -> (i32, i32) {
    %c0_i32 = arith.constant 0 : i32
    %c0_i32_0 = arith.constant 0 : i32
    %c0_i32_1 = arith.constant 0 : i32
    return %c0_i32, %c0_i32_0 : i32, i32
  }
  func.func @transform_7(%arg0: i32) -> (i32, i32) {
    %c0_i32 = arith.constant 0 : i32
    %c0_i32_0 = arith.constant 0 : i32
    %c0_i32_1 = arith.constant 0 : i32
    return %c0_i32, %c0_i32_0 : i32, i32
  }
  func.func @transform_8(%arg0: i32) -> (i32, i32) {
    %c0_i32 = arith.constant 0 : i32
    %c0_i32_0 = arith.constant 0 : i32
    %c0_i32_1 = arith.constant 0 : i32
    return %c0_i32, %c0_i32_0 : i32, i32
  }
  func.func @transform_9(%arg0: i32) -> (i32, i32) {
    %c0_i32 = arith.constant 0 : i32
    %c0_i32_0 = arith.constant 0 : i32
    %c0_i32_1 = arith.constant 0 : i32
    return %c0_i32, %c0_i32_0 : i32, i32
  }
  func.func @transform_10(%arg0: i32) -> (i32, i32) {
    %c0_i32 = arith.constant 0 : i32
    %c0_i32_0 = arith.constant 0 : i32
    %c0_i32_1 = arith.constant 0 : i32
    return %c0_i32, %c0_i32_0 : i32, i32
  }
  func.func @transform_11(%arg0: i32) -> (i32, i32) {
    %c0_i32 = arith.constant 0 : i32
    %c0_i32_0 = arith.constant 0 : i32
    %c0_i32_1 = arith.constant 0 : i32
    return %c0_i32, %c0_i32_0 : i32, i32
  }
  func.func @transform_12(%arg0: i32) -> (i32, i32) {
    %c0_i32 = arith.constant 0 : i32
    %c0_i32_0 = arith.constant 0 : i32
    return %arg0, %c0_i32 : i32, i32
  }
}

</mosaic_0001>

<llo_original>
// kernel: tpu_custom_call.1
$region0: #{tpu_custom_call.1}
  #allocation0 [shape = 'u32[]', space=smem, size = 0x4, offset = 0x4, fixed_abs, tag = 'smem constant byte address 0x4 - core index']
  #allocation1 [shape = 'u32[144,128]{1,0:T(1,128)}', space=vmem, size = 0x12000, scoped, tag = 'internal scratch']
  %s0 = inlined_call_operand.hbm [shape: f32[8,4,256], index: 0, kind: input, shape index: {}]
  %s1 = inlined_call_operand.hbm [shape: f32[8,4,256], index: 1, kind: input, shape index: {}]
  %s2 = inlined_call_operand.hbm [shape: f32[4,256], index: 2, kind: input, shape index: {}]
  %s3 = inlined_call_operand.vmem [shape: f32[4,256], index: 3, kind: input, shape index: {}]
  %s4 = inlined_call_operand.hbm [shape: f32[4,256], index: 4, kind: input, shape index: {}]
  %s5 = inlined_call_operand.vmem [shape: f32[4,256], index: 5, kind: input, shape index: {}]
  %s6 = inlined_call_operand.hbm [shape: f32[4,256], index: 6, kind: input, shape index: {}]
  %s7 = inlined_call_operand.vmem [shape: f32[1,256], index: 7, kind: input, shape index: {}]
  %s8 = inlined_call_operand.hbm [shape: f32[256,256], index: 8, kind: input, shape index: {}]
  %s9 = inlined_call_operand.vmem [shape: f32[1,256], index: 9, kind: input, shape index: {}]
  %s10 = inlined_call_operand.hbm [shape: f32[256,128], index: 10, kind: input, shape index: {}]
  %s11 = inlined_call_operand.vmem [shape: f32[1,128], index: 11, kind: input, shape index: {}]
  %s12 = inlined_call_operand.hbm [shape: f32[8,128], index: 12, kind: output, shape index: {}]
  %s13 = sld [smem:[#allocation0]]
  $region86: #{tpu_custom_call.1} parent=0
    _
  %s15 = ssub.s32 1, %s13
  %s16 = scalar_select 0, %s15, %s13
  $region1: #{tpu_custom_call.1} parent=0
    #allocation2 [shape = 'u8[32768]{0}', space=vmem, size = 0x8000, scoped, tag = 'input window, operand 0, single buffered']
    #allocation3 [shape = 's32[1]{0}', space=sflag, size = 0x4, scoped, tag = 'scoped memory for tpu_custom_call.1']
    #allocation4 [shape = 's32[1]{0}', space=sflag, size = 0x4, scoped, tag = 'scoped memory for tpu_custom_call.1']
    #allocation5 [shape = 'u8[32768]{0}', space=vmem, size = 0x8000, scoped, tag = 'input window, operand 1, single buffered']
    #allocation6 [shape = 's32[1]{0}', space=sflag, size = 0x4, scoped, tag = 'scoped memory for tpu_custom_call.1']
    #allocation7 [shape = 'u8[4096]{0}', space=vmem, size = 0x1000, scoped, tag = 'input window, operand 2, single buffered']
    #allocation8 [shape = 'u8[4096]{0}', space=vmem, size = 0x1000, scoped, tag = 'input window, operand 4, single buffered']
    #allocation9 [shape = 's32[1]{0}', space=sflag, size = 0x4, scoped, tag = 'scoped memory for tpu_custom_call.1']
    #allocation10 [shape = 'u8[4096]{0}', space=vmem, size = 0x1000, scoped, tag = 'input window, operand 6, single buffered']
    #allocation11 [shape = 'u8[262144]{0}', space=vmem, size = 0x40000, scoped, tag = 'input window, operand 8, single buffered']
    #allocation12 [shape = 's32[1]{0}', space=sflag, size = 0x4, scoped, tag = 'scoped memory for tpu_custom_call.1']
    #allocation13 [shape = 'u8[131072]{0}', space=vmem, size = 0x20000, scoped, tag = 'input window, operand 10, single buffered']
    #allocation14 [shape = 'u8[4096]{0}', space=vmem, size = 0x1000, scoped, tag = 'output window, operand 0, single buffered']
    %17 = vsyncpa [#allocation3], 0
    %18 = vsyncpa [#allocation6], 0
    %19 = vsyncpa [#allocation9], 0
    %20 = vsyncpa [#allocation12], 0
    %21 = vsyncpa [#allocation4], 0
    // Predicated region
    $region2: #{tpu_custom_call.1} parent=1 // pred_check
      _
    $region3: #{tpu_custom_call.1} parent=1 // pred_check_branch
      %23 = sbr.rel (0) target = $region5
    $region4: #{tpu_custom_call.1} parent=1 // pred_region
      %s25 = ssub.s32 1024, 1024
      %26 = vsyncadd [#allocation3], %s25
      %s27 = sshll.u32 [#allocation2], 4
      %s28 = int_to_ptr.vmem [resolvable:$true] %s27
      %33 = dma.hbm_to_vmem [thread:$0]  %s0, 1024, %s28, [#allocation3], 128, 128, 8
    $region5: #{tpu_custom_call.1} parent=1 // pred_fallthru
      _
    // Predicated region
    $region6: #{tpu_custom_call.1} parent=1 // pred_check
      _
    $region7: #{tpu_custom_call.1} parent=1 // pred_check_branch
      %35 = sbr.rel (0) target = $region9
    $region8: #{tpu_custom_call.1} parent=1 // pred_region
      %s37 = ssub.s32 1024, 1024
      %38 = vsyncadd [#allocation6], %s37
      %s39 = sshll.u32 [#allocation5], 4
      %s40 = int_to_ptr.vmem [resolvable:$true] %s39
      %45 = dma.hbm_to_vmem [thread:$0]  %s1, 1024, %s40, [#allocation6], 128, 128, 8
    $region9: #{tpu_custom_call.1} parent=1 // pred_fallthru
      _
    // Predicated region
    $region10: #{tpu_custom_call.1} parent=1 // pred_check
      _
    $region11: #{tpu_custom_call.1} parent=1 // pred_check_branch
      %47 = sbr.rel (0) target = $region13
    $region12: #{tpu_custom_call.1} parent=1 // pred_region
      %s49 = ssub.s32 128, 128
      %50 = vsyncadd [#allocation6], %s49
      %s52 = sshll.u32 [#allocation7], 4
      %s53 = int_to_ptr.vmem [resolvable:$true] %s52
      %55 = dma.hbm_to_vmem [thread:$0]  %s2, 128, %s53, [#allocation6]
    $region13: #{tpu_custom_call.1} parent=1 // pred_fallthru
      _
    // Predicated region
    $region14: #{tpu_custom_call.1} parent=1 // pred_check
      _
    $region15: #{tpu_custom_call.1} parent=1 // pred_check_branch
      %57 = sbr.rel (0) target = $region17
    $region16: #{tpu_custom_call.1} parent=1 // pred_region
      _
    $region17: #{tpu_custom_call.1} parent=1 // pred_fallthru
      _
    // Predicated region
    $region18: #{tpu_custom_call.1} parent=1 // pred_check
      _
    $region19: #{tpu_custom_call.1} parent=1 // pred_check_branch
      %59 = sbr.rel (0) target = $region21
    $region20: #{tpu_custom_call.1} parent=1 // pred_region
      %s61 = ssub.s32 128, 128
      %62 = vsyncadd [#allocation9], %s61
      %s64 = sshll.u32 [#allocation8], 4
      %s65 = int_to_ptr.vmem [resolvable:$true] %s64
      %67 = dma.hbm_to_vmem [thread:$0]  %s4, 128, %s65, [#allocation9]
    $region21: #{tpu_custom_call.1} parent=1 // pred_fallthru
      _
    // Predicated region
    $region22: #{tpu_custom_call.1} parent=1 // pred_check
      _
    $region23: #{tpu_custom_call.1} parent=1 // pred_check_branch
      %69 = sbr.rel (0) target = $region25
    $region24: #{tpu_custom_call.1} parent=1 // pred_region
      _
    $region25: #{tpu_custom_call.1} parent=1 // pred_fallthru
      _
    // Predicated region
    $region26: #{tpu_custom_call.1} parent=1 // pred_check
      _
    $region27: #{tpu_custom_call.1} parent=1 // pred_check_branch
      %71 = sbr.rel (0) target = $region29
    $region28: #{tpu_custom_call.1} parent=1 // pred_region
      %s73 = ssub.s32 128, 128
      %74 = vsyncadd [#allocation9], %s73
      %s76 = sshll.u32 [#allocation10], 4
      %s77 = int_to_ptr.vmem [resolvable:$true] %s76
      %79 = dma.hbm_to_vmem [thread:$0]  %s6, 128, %s77, [#allocation9]
    $region29: #{tpu_custom_call.1} parent=1 // pred_fallthru
      _
    // Predicated region
    $region30: #{tpu_custom_call.1} parent=1 // pred_check
      _
    $region31: #{tpu_custom_call.1} parent=1 // pred_check_branch
      %81 = sbr.rel (0) target = $region33
    $region32: #{tpu_custom_call.1} parent=1 // pred_region
      _
    $region33: #{tpu_custom_call.1} parent=1 // pred_fallthru
      _
    // Predicated region
    $region34: #{tpu_custom_call.1} parent=1 // pred_check
      _
    $region35: #{tpu_custom_call.1} parent=1 // pred_check_branch
      %83 = sbr.rel (0) target = $region37
    $region36: #{tpu_custom_call.1} parent=1 // pred_region
      %s85 = ssub.s32 8192, 8192
      %86 = vsyncadd [#allocation12], %s85
      %s87 = sshll.u32 [#allocation11], 4
      %s88 = int_to_ptr.vmem [resolvable:$true] %s87
      %93 = dma.hbm_to_vmem [thread:$0]  %s8, 8192, %s88, [#allocation12], 256, 256, 16
    $region37: #{tpu_custom_call.1} parent=1 // pred_fallthru
      _
    // Predicated region
    $region38: #{tpu_custom_call.1} parent=1 // pred_check
      _
    $region39: #{tpu_custom_call.1} parent=1 // pred_check_branch
      %95 = sbr.rel (0) target = $region41
    $region40: #{tpu_custom_call.1} parent=1 // pred_region
      _
    $region41: #{tpu_custom_call.1} parent=1 // pred_fallthru
      _
    // Predicated region
    $region42: #{tpu_custom_call.1} parent=1 // pred_check
      _
    $region43: #{tpu_custom_call.1} parent=1 // pred_check_branch
      %97 = sbr.rel (0) target = $region45
    $region44: #{tpu_custom_call.1} parent=1 // pred_region
      %s99 = ssub.s32 4096, 4096
      %100 = vsyncadd [#allocation12], %s99
      %s101 = sshll.u32 [#allocation13], 4
      %s102 = int_to_ptr.vmem [resolvable:$true] %s101
      %107 = dma.hbm_to_vmem [thread:$0]  %s10, 4096, %s102, [#allocation12], 128, 128, 8
    $region45: #{tpu_custom_call.1} parent=1 // pred_fallthru
      _
    // Predicated region
    $region46: #{tpu_custom_call.1} parent=1 // pred_check
      _
    $region47: #{tpu_custom_call.1} parent=1 // pred_check_branch
      %109 = sbr.rel (0) target = $region49
    $region48: #{tpu_custom_call.1} parent=1 // pred_region
      _
    $region49: #{tpu_custom_call.1} parent=1 // pred_fallthru
      _
    // Predicated region
    $region50: #{tpu_custom_call.1} parent=1 // pred_check
      _
    $region51: #{tpu_custom_call.1} parent=1 // pred_check_branch
      %111 = sbr.rel (0) target = $region53
    $region52: #{tpu_custom_call.1} parent=1 // pred_region
      %112 = dma.done [#allocation3], 1024
    $region53: #{tpu_custom_call.1} parent=1 // pred_fallthru
      _
    // Predicated region
    $region54: #{tpu_custom_call.1} parent=1 // pred_check
      _
    $region55: #{tpu_custom_call.1} parent=1 // pred_check_branch
      %114 = sbr.rel (0) target = $region57
    $region56: #{tpu_custom_call.1} parent=1 // pred_region
      %115 = dma.done [#allocation6], 1024
    $region57: #{tpu_custom_call.1} parent=1 // pred_fallthru
      _
    // Predicated region
    $region58: #{tpu_custom_call.1} parent=1 // pred_check
      _
    $region59: #{tpu_custom_call.1} parent=1 // pred_check_branch
      %117 = sbr.rel (0) target = $region61
    $region60: #{tpu_custom_call.1} parent=1 // pred_region
      %118 = dma.done [#allocation6], 128
    $region61: #{tpu_custom_call.1} parent=1 // pred_fallthru
      _
    // Predicated region
    $region62: #{tpu_custom_call.1} parent=1 // pred_check
      _
    $region63: #{tpu_custom_call.1} parent=1 // pred_check_branch
      %120 = sbr.rel (0) target = $region65
    $region64: #{tpu_custom_call.1} parent=1 // pred_region
      %121 = dma.done [#allocation9], 128
    $region65: #{tpu_custom_call.1} parent=1 // pred_fallthru
      _
    // Predicated region
    $region66: #{tpu_custom_call.1} parent=1 // pred_check
      _
    $region67: #{tpu_custom_call.1} parent=1 // pred_check_branch
      %123 = sbr.rel (0) target = $region69
    $region68: #{tpu_custom_call.1} parent=1 // pred_region
      %124 = dma.done [#allocation9], 128
    $region69: #{tpu_custom_call.1} parent=1 // pred_fallthru
      _
    // Predicated region
    $region70: #{tpu_custom_call.1} parent=1 // pred_check
      _
    $region71: #{tpu_custom_call.1} parent=1 // pred_check_branch
      %126 = sbr.rel (0) target = $region73
    $region72: #{tpu_custom_call.1} parent=1 // pred_region
      %127 = dma.done [#allocation12], 8192
    $region73: #{tpu_custom_call.1} parent=1 // pred_fallthru
      _
    // Predicated region
    $region74: #{tpu_custom_call.1} parent=1 // pred_check
      _
    $region75: #{tpu_custom_call.1} parent=1 // pred_check_branch
      %129 = sbr.rel (0) target = $region77
    $region76: #{tpu_custom_call.1} parent=1 // pred_region
      %130 = dma.done [#allocation12], 4096
    $region77: #{tpu_custom_call.1} parent=1 // pred_fallthru
      _
    %v131 = vld [vmem:[#allocation2] sm:$0xff]
    %v132 = vld [vmem:[#allocation2 + $0x8] sm:$0xff]
    %v133 = vld [vmem:[#allocation2 + $0x10] sm:$0xff]
    %v134 = vld [vmem:[#allocation2 + $0x18] sm:$0xff]
    %v135 = vld [vmem:[#allocation2 + $0x20] sm:$0xff]
    %v136 = vld [vmem:[#allocation2 + $0x28] sm:$0xff]
    %v137 = vld [vmem:[#allocation2 + $0x30] sm:$0xff]
    %v138 = vld [vmem:[#allocation2 + $0x38] sm:$0xff]
    %v139 = vld [vmem:[#allocation5] sm:$0xff]
    %v140 = vld [vmem:[#allocation5 + $0x8] sm:$0xff]
    %v141 = vld [vmem:[#allocation5 + $0x10] sm:$0xff]
    %v142 = vld [vmem:[#allocation5 + $0x18] sm:$0xff]
    %v143 = vld [vmem:[#allocation5 + $0x20] sm:$0xff]
    %v144 = vld [vmem:[#allocation5 + $0x28] sm:$0xff]
    %v145 = vld [vmem:[#allocation5 + $0x30] sm:$0xff]
    %v146 = vld [vmem:[#allocation5 + $0x38] sm:$0xff]
    %v147 = vld [vmem:[#allocation7] sm:$0xff]
    %v148 = vld [vmem:[%s3] sm:$0xff]
    %v149 = vmul.f32 %v139, %v147
    %v150 = vmul.f32 %v140, %v147
    %v151 = vmul.f32 %v141, %v147
    %v152 = vmul.f32 %v142, %v147
    %v153 = vmul.f32 %v143, %v147
    %v154 = vmul.f32 %v144, %v147
    %v155 = vmul.f32 %v145, %v147
    %v156 = vmul.f32 %v146, %v147
    %v165 = vcombine.high %v149, %v149
    %v166 = vcombine.high %v150, %v150
    %v167 = vcombine.high %v151, %v151
    %v168 = vcombine.high %v152, %v152
    %v169 = vcombine.high %v153, %v153
    %v170 = vcombine.high %v154, %v154
    %v171 = vcombine.high %v155, %v155
    %v172 = vcombine.high %v156, %v156
    %vm181 = vcmask 1043456
    %v182 = vsel %vm181, %v149, 0.0
    %v183 = vsel %vm181, %v165, 0.0
    %v184 = vadd.f32 %v182, %v183
    %185 = vadd.xlane.f32.xlu0 %v184
    %v186 = vpop.xlane.xlu0 %185
    %v187 = vsel %vm181, %v150, 0.0
    %v188 = vsel %vm181, %v166, 0.0
    %v189 = vadd.f32 %v187, %v188
    %190 = vadd.xlane.f32.xlu0 %v189
    %v191 = vpop.xlane.xlu0 %190
    %v192 = vsel %vm181, %v151, 0.0
    %v193 = vsel %vm181, %v167, 0.0
    %v194 = vadd.f32 %v192, %v193
    %195 = vadd.xlane.f32.xlu0 %v194
    %v196 = vpop.xlane.xlu0 %195
    %v197 = vsel %vm181, %v152, 0.0
    %v198 = vsel %vm181, %v168, 0.0
    %v199 = vadd.f32 %v197, %v198
    %200 = vadd.xlane.f32.xlu0 %v199
    %v201 = vpop.xlane.xlu0 %200
    %v202 = vsel %vm181, %v153, 0.0
    %v203 = vsel %vm181, %v169, 0.0
    %v204 = vadd.f32 %v202, %v203
    %205 = vadd.xlane.f32.xlu0 %v204
    %v206 = vpop.xlane.xlu0 %205
    %v207 = vsel %vm181, %v154, 0.0
    %v208 = vsel %vm181, %v170, 0.0
    %v209 = vadd.f32 %v207, %v208
    %210 = vadd.xlane.f32.xlu0 %v209
    %v211 = vpop.xlane.xlu0 %210
    %v212 = vsel %vm181, %v155, 0.0
    %v213 = vsel %vm181, %v171, 0.0
    %v214 = vadd.f32 %v212, %v213
    %215 = vadd.xlane.f32.xlu0 %v214
    %v216 = vpop.xlane.xlu0 %215
    %v217 = vsel %vm181, %v156, 0.0
    %v218 = vsel %vm181, %v172, 0.0
    %v219 = vadd.f32 %v217, %v218
    %220 = vadd.xlane.f32.xlu0 %v219
    %v221 = vpop.xlane.xlu0 %220
    %v222 = vmul.f32 %v139, %v148
    %v223 = vmul.f32 %v140, %v148
    %v224 = vmul.f32 %v141, %v148
    %v225 = vmul.f32 %v142, %v148
    %v226 = vmul.f32 %v143, %v148
    %v227 = vmul.f32 %v144, %v148
    %v228 = vmul.f32 %v145, %v148
    %v229 = vmul.f32 %v146, %v148
    %v238 = vcombine.high %v222, %v222
    %v239 = vcombine.high %v223, %v223
    %v240 = vcombine.high %v224, %v224
    %v241 = vcombine.high %v225, %v225
    %v242 = vcombine.high %v226, %v226
    %v243 = vcombine.high %v227, %v227
    %v244 = vcombine.high %v228, %v228
    %v245 = vcombine.high %v229, %v229
    %v254 = vsel %vm181, %v222, 0.0
    %v255 = vsel %vm181, %v238, 0.0
    %v256 = vadd.f32 %v254, %v255
    %257 = vadd.xlane.f32.xlu0 %v256
    %v258 = vpop.xlane.xlu0 %257
    %v259 = vsel %vm181, %v223, 0.0
    %v260 = vsel %vm181, %v239, 0.0
    %v261 = vadd.f32 %v259, %v260
    %262 = vadd.xlane.f32.xlu0 %v261
    %v263 = vpop.xlane.xlu0 %262
    %v264 = vsel %vm181, %v224, 0.0
    %v265 = vsel %vm181, %v240, 0.0
    %v266 = vadd.f32 %v264, %v265
    %267 = vadd.xlane.f32.xlu0 %v266
    %v268 = vpop.xlane.xlu0 %267
    %v269 = vsel %vm181, %v225, 0.0
    %v270 = vsel %vm181, %v241, 0.0
    %v271 = vadd.f32 %v269, %v270
    %272 = vadd.xlane.f32.xlu0 %v271
    %v273 = vpop.xlane.xlu0 %272
    %v274 = vsel %vm181, %v226, 0.0
    %v275 = vsel %vm181, %v242, 0.0
    %v276 = vadd.f32 %v274, %v275
    %277 = vadd.xlane.f32.xlu0 %v276
    %v278 = vpop.xlane.xlu0 %277
    %v279 = vsel %vm181, %v227, 0.0
    %v280 = vsel %vm181, %v243, 0.0
    %v281 = vadd.f32 %v279, %v280
    %282 = vadd.xlane.f32.xlu0 %v281
    %v283 = vpop.xlane.xlu0 %282
    %v284 = vsel %vm181, %v228, 0.0
    %v285 = vsel %vm181, %v244, 0.0
    %v286 = vadd.f32 %v284, %v285
    %287 = vadd.xlane.f32.xlu0 %v286
    %v288 = vpop.xlane.xlu0 %287
    %v289 = vsel %vm181, %v229, 0.0
    %v290 = vsel %vm181, %v245, 0.0
    %v291 = vadd.f32 %v289, %v290
    %292 = vadd.xlane.f32.xlu0 %v291
    %v293 = vpop.xlane.xlu0 %292
    %v294 = vmul.f32 %v131, %v147
    %v295 = vmul.f32 %v132, %v147
    %v296 = vmul.f32 %v133, %v147
    %v297 = vmul.f32 %v134, %v147
    %v298 = vmul.f32 %v135, %v147
    %v299 = vmul.f32 %v136, %v147
    %v300 = vmul.f32 %v137, %v147
    %v301 = vmul.f32 %v138, %v147
    %v310 = vcombine.high %v294, %v294
    %v311 = vcombine.high %v295, %v295
    %v312 = vcombine.high %v296, %v296
    %v313 = vcombine.high %v297, %v297
    %v314 = vcombine.high %v298, %v298
    %v315 = vcombine.high %v299, %v299
    %v316 = vcombine.high %v300, %v300
    %v317 = vcombine.high %v301, %v301
    %v326 = vsel %vm181, %v294, 0.0
    %v327 = vsel %vm181, %v310, 0.0
    %v328 = vadd.f32 %v326, %v327
    %329 = vadd.xlane.f32.xlu0 %v328
    %v330 = vpop.xlane.xlu0 %329
    %v331 = vsel %vm181, %v295, 0.0
    %v332 = vsel %vm181, %v311, 0.0
    %v333 = vadd.f32 %v331, %v332
    %334 = vadd.xlane.f32.xlu0 %v333
    %v335 = vpop.xlane.xlu0 %334
    %v336 = vsel %vm181, %v296, 0.0
    %v337 = vsel %vm181, %v312, 0.0
    %v338 = vadd.f32 %v336, %v337
    %339 = vadd.xlane.f32.xlu0 %v338
    %v340 = vpop.xlane.xlu0 %339
    %v341 = vsel %vm181, %v297, 0.0
    %v342 = vsel %vm181, %v313, 0.0
    %v343 = vadd.f32 %v341, %v342
    %344 = vadd.xlane.f32.xlu0 %v343
    %v345 = vpop.xlane.xlu0 %344
    %v346 = vsel %vm181, %v298, 0.0
    %v347 = vsel %vm181, %v314, 0.0
    %v348 = vadd.f32 %v346, %v347
    %349 = vadd.xlane.f32.xlu0 %v348
    %v350 = vpop.xlane.xlu0 %349
    %v351 = vsel %vm181, %v299, 0.0
    %v352 = vsel %vm181, %v315, 0.0
    %v353 = vadd.f32 %v351, %v352
    %354 = vadd.xlane.f32.xlu0 %v353
    %v355 = vpop.xlane.xlu0 %354
    %v356 = vsel %vm181, %v300, 0.0
    %v357 = vsel %vm181, %v316, 0.0
    %v358 = vadd.f32 %v356, %v357
    %359 = vadd.xlane.f32.xlu0 %v358
    %v360 = vpop.xlane.xlu0 %359
    %v361 = vsel %vm181, %v301, 0.0
    %v362 = vsel %vm181, %v317, 0.0
    %v363 = vadd.f32 %v361, %v362
    %364 = vadd.xlane.f32.xlu0 %v363
    %v365 = vpop.xlane.xlu0 %364
    %v366 = vld [vmem:[%s7] sm:$0x3]
    %v367 = vld [vmem:[#allocation8] sm:$0xff]
    %v376 = vlaneseq
    %v377 = vand.u32 %v376, 127
    %v378 = vlaneseq
    %v379 = vshrl.u32 %v378, 7
    %v380 = vsub.s32 %v377, %v379
    %v381 = vrot.slane %v186, %v380
    %v382 = vlaneseq
    %v383 = vshrl.u32 %v382, 7
    %v384 = vsub.s32 %v377, %v383
    %v385 = vrot.slane %v191, %v384
    %v386 = vlaneseq
    %v387 = vshrl.u32 %v386, 7
    %v388 = vsub.s32 %v377, %v387
    %v389 = vrot.slane %v196, %v388
    %v390 = vlaneseq
    %v391 = vshrl.u32 %v390, 7
    %v392 = vsub.s32 %v377, %v391
    %v393 = vrot.slane %v201, %v392
    %v394 = vlaneseq
    %v395 = vshrl.u32 %v394, 7
    %v396 = vsub.s32 %v377, %v395
    %v397 = vrot.slane %v206, %v396
    %v398 = vlaneseq
    %v399 = vshrl.u32 %v398, 7
    %v400 = vsub.s32 %v377, %v399
    %v401 = vrot.slane %v211, %v400
    %v402 = vlaneseq
    %v403 = vshrl.u32 %v402, 7
    %v404 = vsub.s32 %v377, %v403
    %v405 = vrot.slane %v216, %v404
    %v406 = vlaneseq
    %v407 = vshrl.u32 %v406, 7
    %v408 = vsub.s32 %v377, %v407
    %v409 = vrot.slane %v221, %v408
    %vm410 = vcmask 1041409
    %v411 = vsel %vm410, %v385, %v381
    %vm412 = vcmask 1042434
    %v413 = vsel %vm412, %v389, %v411
    %vm414 = vcmask 1043459
    %v415 = vsel %vm414, %v393, %v413
    %vm416 = vcmask 1044484
    %v417 = vsel %vm416, %v397, %v415
    %vm418 = vcmask 1045509
    %v419 = vsel %vm418, %v401, %v417
    %vm420 = vcmask 1046534
    %v421 = vsel %vm420, %v405, %v419
    %vm422 = vcmask 1047559
    %v423 = vsel %vm422, %v409, %v421
    %v425 = vcombine.high %v367, %v367
    %vm426 = vcmask 31744
    %v427 = vsel %vm426, %v423, 0
    %v429 = vsel %vm181, %v367, 0
    %v431 = vsel %vm181, %v425, 0
    %433 = vmatprep.subr.mxu0 %v431
    %434 = vmatpush1.msra.mxu0 %v429
    %435 = vmatprep.subr.mxu0 0.0
    %436 = vmatpush1.msra.mxu0 0.0
    %437 = vmatprep.subr.mxu0 0.0
    %438 = vmatpush1.msra.mxu0 0.0
    %439 = vmatprep.subr.mxu0 0.0
    %440 = vmatpush1.msra.mxu0 0.0
    %441 = vmatprep.subr.mxu0 0.0
    %442 = vmatpush1.msra.mxu0 0.0
    %443 = vmatprep.subr.mxu0 0.0
    %444 = vmatpush1.msra.mxu0 0.0
    %445 = vmatprep.subr.mxu0 0.0
    %446 = vmatpush1.msra.mxu0 0.0
    %447 = vmatprep.subr.mxu0 0.0
    %448 = vmatpush1.msra.mxu0 0.0
    %449 = vmatprep.subr.mxu0 0.0
    %450 = vmatpush1.msra.mxu0 0.0
    %451 = vmatprep.subr.mxu0 0.0
    %452 = vmatpush1.msra.mxu0 0.0
    %453 = vmatprep.subr.mxu0 0.0
    %454 = vmatpush1.msra.mxu0 0.0
    %455 = vmatprep.subr.mxu0 0.0
    %456 = vmatpush1.msra.mxu0 0.0
    %457 = vmatprep.subr.mxu0 0.0
    %458 = vmatpush1.msra.mxu0 0.0
    %459 = vmatprep.subr.mxu0 0.0
    %460 = vmatpush1.msra.mxu0 0.0
    %461 = vmatprep.subr.mxu0 0.0
    %462 = vmatpush1.msra.mxu0 0.0
    %463 = vmatprep.subr.mxu0 0.0
    %464 = vmatpush1.msra.mxu0 0.0
    %465 = vmatprep.subr.mxu0 0.0
    %466 = vmatpush1.msra.mxu0 0.0
    %467 = vmatprep.subr.mxu0 0.0
    %468 = vmatpush1.msra.mxu0 0.0
    %469 = vmatprep.subr.mxu0 0.0
    %470 = vmatpush1.msra.mxu0 0.0
    %471 = vmatprep.subr.mxu0 0.0
    %472 = vmatpush1.msra.mxu0 0.0
    %473 = vmatprep.subr.mxu0 0.0
    %474 = vmatpush1.msra.mxu0 0.0
    %475 = vmatprep.subr.mxu0 0.0
    %476 = vmatpush1.msra.mxu0 0.0
    %477 = vmatprep.subr.mxu0 0.0
    %478 = vmatpush1.msra.mxu0 0.0
    %479 = vmatprep.subr.mxu0 0.0
    %480 = vmatpush1.msra.mxu0 0.0
    %481 = vmatprep.subr.mxu0 0.0
    %482 = vmatpush1.msra.mxu0 0.0
    %483 = vmatprep.subr.mxu0 0.0
    %484 = vmatpush1.msra.mxu0 0.0
    %485 = vmatprep.subr.mxu0 0.0
    %486 = vmatpush1.msra.mxu0 0.0
    %487 = vmatprep.subr.mxu0 0.0
    %488 = vmatpush1.msra.mxu0 0.0
    %489 = vmatprep.subr.mxu0 0.0
    %490 = vmatpush1.msra.mxu0 0.0
    %491 = vmatprep.subr.mxu0 0.0
    %492 = vmatpush1.msra.mxu0 0.0
    %493 = vmatprep.subr.mxu0 0.0
    %494 = vmatpush1.msra.mxu0 0.0
    %495 = vmatprep.subr.mxu0 0.0
    %496 = vmatpush1.msra.mxu0 0.0
    %497 = vmatprep.mubr.f32.mxu0 0.0
    %498 = vmatmul.mubr.f32.gmra.mrb[0].mxu0 %v427
    %v499 = vpop.f32.mrb[0].mxu0
    %v500 = vadd.f32 0.0, %v499
    %v501 = vpop.f32.mrb[0].mxu0
    %v502 = vadd.f32 0.0, %v501
    %503 = vdwg.mxu0
    %v505 = vlaneseq
    %v506 = vshrl.u32 %v505, 7
    %v507 = vsub.s32 0, %v506
    %v508 = vrot.slane %v366, %v507
    %v509 = vlaneseq
    %v510 = vshrl.u32 %v509, 7
    %v511 = vsub.s32 1, %v510
    %v512 = vrot.slane %v366, %v511
    %v515 = vadd.f32 %v508, %v500
    %v516 = vadd.f32 %v512, %v502
    %v517 = vld [vmem:[%s5] sm:$0xff]
    %v526 = vlaneseq
    %v527 = vshrl.u32 %v526, 7
    %v528 = vsub.s32 %v377, %v527
    %v529 = vrot.slane %v258, %v528
    %v530 = vlaneseq
    %v531 = vshrl.u32 %v530, 7
    %v532 = vsub.s32 %v377, %v531
    %v533 = vrot.slane %v263, %v532
    %v534 = vlaneseq
    %v535 = vshrl.u32 %v534, 7
    %v536 = vsub.s32 %v377, %v535
    %v537 = vrot.slane %v268, %v536
    %v538 = vlaneseq
    %v539 = vshrl.u32 %v538, 7
    %v540 = vsub.s32 %v377, %v539
    %v541 = vrot.slane %v273, %v540
    %v542 = vlaneseq
    %v543 = vshrl.u32 %v542, 7
    %v544 = vsub.s32 %v377, %v543
    %v545 = vrot.slane %v278, %v544
    %v546 = vlaneseq
    %v547 = vshrl.u32 %v546, 7
    %v548 = vsub.s32 %v377, %v547
    %v549 = vrot.slane %v283, %v548
    %v550 = vlaneseq
    %v551 = vshrl.u32 %v550, 7
    %v552 = vsub.s32 %v377, %v551
    %v553 = vrot.slane %v288, %v552
    %v554 = vlaneseq
    %v555 = vshrl.u32 %v554, 7
    %v556 = vsub.s32 %v377, %v555
    %v557 = vrot.slane %v293, %v556
    %v558 = vsel %vm410, %v533, %v529
    %v559 = vsel %vm412, %v537, %v558
    %v560 = vsel %vm414, %v541, %v559
    %v561 = vsel %vm416, %v545, %v560
    %v562 = vsel %vm418, %v549, %v561
    %v563 = vsel %vm420, %v553, %v562
    %v564 = vsel %vm422, %v557, %v563
    %v566 = vcombine.high %v517, %v517
    %v567 = vsel %vm426, %v564, 0
    %v569 = vsel %vm181, %v517, 0
    %v571 = vsel %vm181, %v566, 0
    %573 = vmatprep.subr.mxu0 %v571
    %574 = vmatpush1.msra.mxu0 %v569
    %575 = vmatprep.subr.mxu0 0.0
    %576 = vmatpush1.msra.mxu0 0.0
    %577 = vmatprep.subr.mxu0 0.0
    %578 = vmatpush1.msra.mxu0 0.0
    %579 = vmatprep.subr.mxu0 0.0
    %580 = vmatpush1.msra.mxu0 0.0
    %581 = vmatprep.subr.mxu0 0.0
    %582 = vmatpush1.msra.mxu0 0.0
    %583 = vmatprep.subr.mxu0 0.0
    %584 = vmatpush1.msra.mxu0 0.0
    %585 = vmatprep.subr.mxu0 0.0
    %586 = vmatpush1.msra.mxu0 0.0
    %587 = vmatprep.subr.mxu0 0.0
    %588 = vmatpush1.msra.mxu0 0.0
    %589 = vmatprep.subr.mxu0 0.0
    %590 = vmatpush1.msra.mxu0 0.0
    %591 = vmatprep.subr.mxu0 0.0
    %592 = vmatpush1.msra.mxu0 0.0
    %593 = vmatprep.subr.mxu0 0.0
    %594 = vmatpush1.msra.mxu0 0.0
    %595 = vmatprep.subr.mxu0 0.0
    %596 = vmatpush1.msra.mxu0 0.0
    %597 = vmatprep.subr.mxu0 0.0
    %598 = vmatpush1.msra.mxu0 0.0
    %599 = vmatprep.subr.mxu0 0.0
    %600 = vmatpush1.msra.mxu0 0.0
    %601 = vmatprep.subr.mxu0 0.0
    %602 = vmatpush1.msra.mxu0 0.0
    %603 = vmatprep.subr.mxu0 0.0
    %604 = vmatpush1.msra.mxu0 0.0
    %605 = vmatprep.subr.mxu0 0.0
    %606 = vmatpush1.msra.mxu0 0.0
    %607 = vmatprep.subr.mxu0 0.0
    %608 = vmatpush1.msra.mxu0 0.0
    %609 = vmatprep.subr.mxu0 0.0
    %610 = vmatpush1.msra.mxu0 0.0
    %611 = vmatprep.subr.mxu0 0.0
    %612 = vmatpush1.msra.mxu0 0.0
    %613 = vmatprep.subr.mxu0 0.0
    %614 = vmatpush1.msra.mxu0 0.0
    %615 = vmatprep.subr.mxu0 0.0
    %616 = vmatpush1.msra.mxu0 0.0
    %617 = vmatprep.subr.mxu0 0.0
    %618 = vmatpush1.msra.mxu0 0.0
    %619 = vmatprep.subr.mxu0 0.0
    %620 = vmatpush1.msra.mxu0 0.0
    %621 = vmatprep.subr.mxu0 0.0
    %622 = vmatpush1.msra.mxu0 0.0
    %623 = vmatprep.subr.mxu0 0.0
    %624 = vmatpush1.msra.mxu0 0.0
    %625 = vmatprep.subr.mxu0 0.0
    %626 = vmatpush1.msra.mxu0 0.0
    %627 = vmatprep.subr.mxu0 0.0
    %628 = vmatpush1.msra.mxu0 0.0
    %629 = vmatprep.subr.mxu0 0.0
    %630 = vmatpush1.msra.mxu0 0.0
    %631 = vmatprep.subr.mxu0 0.0
    %632 = vmatpush1.msra.mxu0 0.0
    %633 = vmatprep.subr.mxu0 0.0
    %634 = vmatpush1.msra.mxu0 0.0
    %635 = vmatprep.subr.mxu0 0.0
    %636 = vmatpush1.msra.mxu0 0.0
    %637 = vmatprep.mubr.f32.mxu0 0.0
    %638 = vmatmul.mubr.f32.gmra.mrb[0].mxu0 %v567
    %v639 = vpop.f32.mrb[0].mxu0
    %v640 = vadd.f32 0.0, %v639
    %v641 = vpop.f32.mrb[0].mxu0
    %v642 = vadd.f32 0.0, %v641
    %643 = vdwg.mxu0
    %v644 = vadd.f32 %v515, %v640
    %v645 = vadd.f32 %v516, %v642
    %v646 = vld [vmem:[#allocation10] sm:$0xff]
    %v655 = vlaneseq
    %v656 = vshrl.u32 %v655, 7
    %v657 = vsub.s32 %v377, %v656
    %v658 = vrot.slane %v330, %v657
    %v659 = vlaneseq
    %v660 = vshrl.u32 %v659, 7
    %v661 = vsub.s32 %v377, %v660
    %v662 = vrot.slane %v335, %v661
    %v663 = vlaneseq
    %v664 = vshrl.u32 %v663, 7
    %v665 = vsub.s32 %v377, %v664
    %v666 = vrot.slane %v340, %v665
    %v667 = vlaneseq
    %v668 = vshrl.u32 %v667, 7
    %v669 = vsub.s32 %v377, %v668
    %v670 = vrot.slane %v345, %v669
    %v671 = vlaneseq
    %v672 = vshrl.u32 %v671, 7
    %v673 = vsub.s32 %v377, %v672
    %v674 = vrot.slane %v350, %v673
    %v675 = vlaneseq
    %v676 = vshrl.u32 %v675, 7
    %v677 = vsub.s32 %v377, %v676
    %v678 = vrot.slane %v355, %v677
    %v679 = vlaneseq
    %v680 = vshrl.u32 %v679, 7
    %v681 = vsub.s32 %v377, %v680
    %v682 = vrot.slane %v360, %v681
    %v683 = vlaneseq
    %v684 = vshrl.u32 %v683, 7
    %v685 = vsub.s32 %v377, %v684
    %v686 = vrot.slane %v365, %v685
    %v687 = vsel %vm410, %v662, %v658
    %v688 = vsel %vm412, %v666, %v687
    %v689 = vsel %vm414, %v670, %v688
    %v690 = vsel %vm416, %v674, %v689
    %v691 = vsel %vm418, %v678, %v690
    %v692 = vsel %vm420, %v682, %v691
    %v693 = vsel %vm422, %v686, %v692
    %v695 = vcombine.high %v646, %v646
    %v696 = vsel %vm426, %v693, 0
    %v698 = vsel %vm181, %v646, 0
    %v700 = vsel %vm181, %v695, 0
    %702 = vmatprep.subr.mxu0 %v700
    %703 = vmatpush1.msra.mxu0 %v698
    %704 = vmatprep.subr.mxu0 0.0
    %705 = vmatpush1.msra.mxu0 0.0
    %706 = vmatprep.subr.mxu0 0.0
    %707 = vmatpush1.msra.mxu0 0.0
    %708 = vmatprep.subr.mxu0 0.0
    %709 = vmatpush1.msra.mxu0 0.0
    %710 = vmatprep.subr.mxu0 0.0
    %711 = vmatpush1.msra.mxu0 0.0
    %712 = vmatprep.subr.mxu0 0.0
    %713 = vmatpush1.msra.mxu0 0.0
    %714 = vmatprep.subr.mxu0 0.0
    %715 = vmatpush1.msra.mxu0 0.0
    %716 = vmatprep.subr.mxu0 0.0
    %717 = vmatpush1.msra.mxu0 0.0
    %718 = vmatprep.subr.mxu0 0.0
    %719 = vmatpush1.msra.mxu0 0.0
    %720 = vmatprep.subr.mxu0 0.0
    %721 = vmatpush1.msra.mxu0 0.0
    %722 = vmatprep.subr.mxu0 0.0
    %723 = vmatpush1.msra.mxu0 0.0
    %724 = vmatprep.subr.mxu0 0.0
    %725 = vmatpush1.msra.mxu0 0.0
    %726 = vmatprep.subr.mxu0 0.0
    %727 = vmatpush1.msra.mxu0 0.0
    %728 = vmatprep.subr.mxu0 0.0
    %729 = vmatpush1.msra.mxu0 0.0
    %730 = vmatprep.subr.mxu0 0.0
    %731 = vmatpush1.msra.mxu0 0.0
    %732 = vmatprep.subr.mxu0 0.0
    %733 = vmatpush1.msra.mxu0 0.0
    %734 = vmatprep.subr.mxu0 0.0
    %735 = vmatpush1.msra.mxu0 0.0
    %736 = vmatprep.subr.mxu0 0.0
    %737 = vmatpush1.msra.mxu0 0.0
    %738 = vmatprep.subr.mxu0 0.0
    %739 = vmatpush1.msra.mxu0 0.0
    %740 = vmatprep.subr.mxu0 0.0
    %741 = vmatpush1.msra.mxu0 0.0
    %742 = vmatprep.subr.mxu0 0.0
    %743 = vmatpush1.msra.mxu0 0.0
    %744 = vmatprep.subr.mxu0 0.0
    %745 = vmatpush1.msra.mxu0 0.0
    %746 = vmatprep.subr.mxu0 0.0
    %747 = vmatpush1.msra.mxu0 0.0
    %748 = vmatprep.subr.mxu0 0.0
    %749 = vmatpush1.msra.mxu0 0.0
    %750 = vmatprep.subr.mxu0 0.0
    %751 = vmatpush1.msra.mxu0 0.0
    %752 = vmatprep.subr.mxu0 0.0
    %753 = vmatpush1.msra.mxu0 0.0
    %754 = vmatprep.subr.mxu0 0.0
    %755 = vmatpush1.msra.mxu0 0.0
    %756 = vmatprep.subr.mxu0 0.0
    %757 = vmatpush1.msra.mxu0 0.0
    %758 = vmatprep.subr.mxu0 0.0
    %759 = vmatpush1.msra.mxu0 0.0
    %760 = vmatprep.subr.mxu0 0.0
    %761 = vmatpush1.msra.mxu0 0.0
    %762 = vmatprep.subr.mxu0 0.0
    %763 = vmatpush1.msra.mxu0 0.0
    %764 = vmatprep.subr.mxu0 0.0
    %765 = vmatpush1.msra.mxu0 0.0
    %766 = vmatprep.mubr.f32.mxu0 0.0
    %767 = vmatmul.mubr.f32.gmra.mrb[0].mxu0 %v696
    %v768 = vpop.f32.mrb[0].mxu0
    %v769 = vadd.f32 0.0, %v768
    %v770 = vpop.f32.mrb[0].mxu0
    %v771 = vadd.f32 0.0, %v770
    %772 = vdwg.mxu0
    %v773 = vadd.f32 %v644, %v769
    %v774 = vadd.f32 %v645, %v771
    %v775 = vmul.f32 %v773, 0.5
    %v776 = vmul.f32 %v774, 0.5
    %v777 = vmul.f32 %v773, 0.70710677
    %v778 = vmul.f32 %v774, 0.70710677
    %vm779 = vcmp.ge.f32.partialorder %v777, 0.0
    %vm780 = vcmp.ge.f32.partialorder %v778, 0.0
    %v781 = vsel %vm779, 1.0, -1.0
    %v782 = vsel %vm780, 1.0, -1.0
    %v783 = vand.u32 2147483647, %v777
    %v784 = vand.u32 2147483647, %v778
    %v785 = vmul.f32 %v783, 0.3275911
    %v786 = vmul.f32 %v784, 0.3275911
    %v787 = vadd.f32 %v785, 1.0
    %v788 = vadd.f32 %v786, 1.0
    %v789 = vrcp.pop %v787
    %v790 = vmul.f32 1.0, %v789
    %v791 = vrcp.pop %v788
    %v792 = vmul.f32 1.0, %v791
    %v793 = vmul.f32 %v790, 1.0614054
    %v794 = vmul.f32 %v792, 1.0614054
    %v795 = vadd.f32 %v793, -1.4531521
    %v796 = vadd.f32 %v794, -1.4531521
    %v797 = vmul.f32 %v795, %v790
    %v798 = vmul.f32 %v796, %v792
    %v799 = vadd.f32 %v797, 1.4214138
    %v800 = vadd.f32 %v798, 1.4214138
    %v801 = vmul.f32 %v799, %v790
    %v802 = vmul.f32 %v800, %v792
    %v803 = vadd.f32 %v801, -0.28449672
    %v804 = vadd.f32 %v802, -0.28449672
    %v805 = vmul.f32 %v803, %v790
    %v806 = vmul.f32 %v804, %v792
    %v807 = vadd.f32 %v805, 0.2548296
    %v808 = vadd.f32 %v806, 0.2548296
    %v809 = vmul.f32 %v807, %v790
    %v810 = vmul.f32 %v808, %v792
    %v811 = vsub.f32 0.0, %v783
    %v812 = vsub.f32 0.0, %v784
    %v813 = vmul.f32 %v811, %v783
    %v814 = vmul.f32 %v812, %v784
    %v815 = vmul.f32 %v813, 1.442695
    %v816 = vpow.pop %v815
    %v817 = vmul.f32 %v814, 1.442695
    %v818 = vpow.pop %v817
    %v819 = vmul.f32 %v809, %v816
    %v820 = vmul.f32 %v810, %v818
    %v821 = vsub.f32 1.0, %v819
    %v822 = vsub.f32 1.0, %v820
    %v823 = vmul.f32 %v781, %v821
    %v824 = vmul.f32 %v782, %v822
    %v825 = vadd.f32 %v823, 1.0
    %v826 = vadd.f32 %v824, 1.0
    %v827 = vmul.f32 %v775, %v825
    %v828 = vmul.f32 %v776, %v826
    %v829 = vld [vmem:[#allocation11] sm:$0xff]
    %v830 = vld [vmem:[#allocation11 + $0x8] sm:$0xff]
    %v831 = vld [vmem:[#allocation11 + $0x10] sm:$0xff]
    %v832 = vld [vmem:[#allocation11 + $0x18] sm:$0xff]
    %v833 = vld [vmem:[#allocation11 + $0x20] sm:$0xff]
    %v834 = vld [vmem:[#allocation11 + $0x28] sm:$0xff]
    %v835 = vld [vmem:[#allocation11 + $0x30] sm:$0xff]
    %v836 = vld [vmem:[#allocation11 + $0x38] sm:$0xff]
    %v837 = vld [vmem:[#allocation11 + $0x40] sm:$0xff]
    %v838 = vld [vmem:[#allocation11 + $0x48] sm:$0xff]
    %v839 = vld [vmem:[#allocation11 + $0x50] sm:$0xff]
    %v840 = vld [vmem:[#allocation11 + $0x58] sm:$0xff]
    %v841 = vld [vmem:[#allocation11 + $0x60] sm:$0xff]
    %v842 = vld [vmem:[#allocation11 + $0x68] sm:$0xff]
    %v843 = vld [vmem:[#allocation11 + $0x70] sm:$0xff]
    %v844 = vld [vmem:[#allocation11 + $0x78] sm:$0xff]
    %v845 = vld [vmem:[#allocation11 + $0x80] sm:$0xff]
    %v846 = vld [vmem:[#allocation11 + $0x88] sm:$0xff]
    %v847 = vld [vmem:[#allocation11 + $0x90] sm:$0xff]
    %v848 = vld [vmem:[#allocation11 + $0x98] sm:$0xff]
    %v849 = vld [vmem:[#allocation11 + $0xa0] sm:$0xff]
    %v850 = vld [vmem:[#allocation11 + $0xa8] sm:$0xff]
    %v851 = vld [vmem:[#allocation11 + $0xb0] sm:$0xff]
    %v852 = vld [vmem:[#allocation11 + $0xb8] sm:$0xff]
    %v853 = vld [vmem:[#allocation11 + $0xc0] sm:$0xff]
    %v854 = vld [vmem:[#allocation11 + $0xc8] sm:$0xff]
    %v855 = vld [vmem:[#allocation11 + $0xd0] sm:$0xff]
    %v856 = vld [vmem:[#allocation11 + $0xd8] sm:$0xff]
    %v857 = vld [vmem:[#allocation11 + $0xe0] sm:$0xff]
    %v858 = vld [vmem:[#allocation11 + $0xe8] sm:$0xff]
    %v859 = vld [vmem:[#allocation11 + $0xf0] sm:$0xff]
    %v860 = vld [vmem:[#allocation11 + $0xf8] sm:$0xff]
    %v861 = vld [vmem:[#allocation11 + $0x100] sm:$0xff]
    %v862 = vld [vmem:[#allocation11 + $0x108] sm:$0xff]
    %v863 = vld [vmem:[#allocation11 + $0x110] sm:$0xff]
    %v864 = vld [vmem:[#allocation11 + $0x118] sm:$0xff]
    %v865 = vld [vmem:[#allocation11 + $0x120] sm:$0xff]
    %v866 = vld [vmem:[#allocation11 + $0x128] sm:$0xff]
    %v867 = vld [vmem:[#allocation11 + $0x130] sm:$0xff]
    %v868 = vld [vmem:[#allocation11 + $0x138] sm:$0xff]
    %v869 = vld [vmem:[#allocation11 + $0x140] sm:$0xff]
    %v870 = vld [vmem:[#allocation11 + $0x148] sm:$0xff]
    %v871 = vld [vmem:[#allocation11 + $0x150] sm:$0xff]
    %v872 = vld [vmem:[#allocation11 + $0x158] sm:$0xff]
    %v873 = vld [vmem:[#allocation11 + $0x160] sm:$0xff]
    %v874 = vld [vmem:[#allocation11 + $0x168] sm:$0xff]
    %v875 = vld [vmem:[#allocation11 + $0x170] sm:$0xff]
    %v876 = vld [vmem:[#allocation11 + $0x178] sm:$0xff]
    %v877 = vld [vmem:[#allocation11 + $0x180] sm:$0xff]
    %v878 = vld [vmem:[#allocation11 + $0x188] sm:$0xff]
    %v879 = vld [vmem:[#allocation11 + $0x190] sm:$0xff]
    %v880 = vld [vmem:[#allocation11 + $0x198] sm:$0xff]
    %v881 = vld [vmem:[#allocation11 + $0x1a0] sm:$0xff]
    %v882 = vld [vmem:[#allocation11 + $0x1a8] sm:$0xff]
    %v883 = vld [vmem:[#allocation11 + $0x1b0] sm:$0xff]
    %v884 = vld [vmem:[#allocation11 + $0x1b8] sm:$0xff]
    %v885 = vld [vmem:[#allocation11 + $0x1c0] sm:$0xff]
    %v886 = vld [vmem:[#allocation11 + $0x1c8] sm:$0xff]
    %v887 = vld [vmem:[#allocation11 + $0x1d0] sm:$0xff]
    %v888 = vld [vmem:[#allocation11 + $0x1d8] sm:$0xff]
    %v889 = vld [vmem:[#allocation11 + $0x1e0] sm:$0xff]
    %v890 = vld [vmem:[#allocation11 + $0x1e8] sm:$0xff]
    %v891 = vld [vmem:[#allocation11 + $0x1f0] sm:$0xff]
    %v892 = vld [vmem:[#allocation11 + $0x1f8] sm:$0xff]
    %v893 = vld [vmem:[%s9] sm:$0x3]
    %v895 = vlaneseq
    %v896 = vshrl.u32 %v895, 7
    %v897 = vsub.s32 0, %v896
    %v898 = vrot.slane %v893, %v897
    %v899 = vlaneseq
    %v900 = vshrl.u32 %v899, 7
    %v901 = vsub.s32 1, %v900
    %v902 = vrot.slane %v893, %v901
    %905 = vmatprep.subr.mxu0 %v830
    %906 = vmatpush1.msra.mxu0 %v829
    %907 = vmatprep.subr.mxu0 %v832
    %908 = vmatpush1.msra.mxu0 %v831
    %909 = vmatprep.subr.mxu0 %v834
    %910 = vmatpush1.msra.mxu0 %v833
    %911 = vmatprep.subr.mxu0 %v836
    %912 = vmatpush1.msra.mxu0 %v835
    %913 = vmatprep.subr.mxu0 %v838
    %914 = vmatpush1.msra.mxu0 %v837
    %915 = vmatprep.subr.mxu0 %v840
    %916 = vmatpush1.msra.mxu0 %v839
    %917 = vmatprep.subr.mxu0 %v842
    %918 = vmatpush1.msra.mxu0 %v841
    %919 = vmatprep.subr.mxu0 %v844
    %920 = vmatpush1.msra.mxu0 %v843
    %921 = vmatprep.subr.mxu0 %v846
    %922 = vmatpush1.msra.mxu0 %v845
    %923 = vmatprep.subr.mxu0 %v848
    %924 = vmatpush1.msra.mxu0 %v847
    %925 = vmatprep.subr.mxu0 %v850
    %926 = vmatpush1.msra.mxu0 %v849
    %927 = vmatprep.subr.mxu0 %v852
    %928 = vmatpush1.msra.mxu0 %v851
    %929 = vmatprep.subr.mxu0 %v854
    %930 = vmatpush1.msra.mxu0 %v853
    %931 = vmatprep.subr.mxu0 %v856
    %932 = vmatpush1.msra.mxu0 %v855
    %933 = vmatprep.subr.mxu0 %v858
    %934 = vmatpush1.msra.mxu0 %v857
    %935 = vmatprep.subr.mxu0 %v860
    %936 = vmatpush1.msra.mxu0 %v859
    %937 = vmatprep.subr.mxu0 %v862
    %938 = vmatpush1.msra.mxu0 %v861
    %939 = vmatprep.subr.mxu0 %v864
    %940 = vmatpush1.msra.mxu0 %v863
    %941 = vmatprep.subr.mxu0 %v866
    %942 = vmatpush1.msra.mxu0 %v865
    %943 = vmatprep.subr.mxu0 %v868
    %944 = vmatpush1.msra.mxu0 %v867
    %945 = vmatprep.subr.mxu0 %v870
    %946 = vmatpush1.msra.mxu0 %v869
    %947 = vmatprep.subr.mxu0 %v872
    %948 = vmatpush1.msra.mxu0 %v871
    %949 = vmatprep.subr.mxu0 %v874
    %950 = vmatpush1.msra.mxu0 %v873
    %951 = vmatprep.subr.mxu0 %v876
    %952 = vmatpush1.msra.mxu0 %v875
    %953 = vmatprep.subr.mxu0 %v878
    %954 = vmatpush1.msra.mxu0 %v877
    %955 = vmatprep.subr.mxu0 %v880
    %956 = vmatpush1.msra.mxu0 %v879
    %957 = vmatprep.subr.mxu0 %v882
    %958 = vmatpush1.msra.mxu0 %v881
    %959 = vmatprep.subr.mxu0 %v884
    %960 = vmatpush1.msra.mxu0 %v883
    %961 = vmatprep.subr.mxu0 %v886
    %962 = vmatpush1.msra.mxu0 %v885
    %963 = vmatprep.subr.mxu0 %v888
    %964 = vmatpush1.msra.mxu0 %v887
    %965 = vmatprep.subr.mxu0 %v890
    %966 = vmatpush1.msra.mxu0 %v889
    %967 = vmatprep.subr.mxu0 %v892
    %968 = vmatpush1.msra.mxu0 %v891
    %969 = vmatprep.mubr.f32.mxu0 %v828
    %970 = vmatmul.mubr.f32.gmra.mrb[0].mxu0 %v827
    %v971 = vpop.f32.mrb[0].mxu0
    %v972 = vadd.f32 %v898, %v971
    %v973 = vpop.f32.mrb[0].mxu0
    %v974 = vadd.f32 %v902, %v973
    %975 = vdwg.mxu0
    %v976 = vmul.f32 %v972, 0.5
    %v977 = vmul.f32 %v974, 0.5
    %v978 = vmul.f32 %v972, 0.70710677
    %v979 = vmul.f32 %v974, 0.70710677
    %vm980 = vcmp.ge.f32.partialorder %v978, 0.0
    %vm981 = vcmp.ge.f32.partialorder %v979, 0.0
    %v982 = vsel %vm980, 1.0, -1.0
    %v983 = vsel %vm981, 1.0, -1.0
    %v984 = vand.u32 2147483647, %v978
    %v985 = vand.u32 2147483647, %v979
    %v986 = vmul.f32 %v984, 0.3275911
    %v987 = vmul.f32 %v985, 0.3275911
    %v988 = vadd.f32 %v986, 1.0
    %v989 = vadd.f32 %v987, 1.0
    %v990 = vrcp.pop %v988
    %v991 = vmul.f32 1.0, %v990
    %v992 = vrcp.pop %v989
    %v993 = vmul.f32 1.0, %v992
    %v994 = vmul.f32 %v991, 1.0614054
    %v995 = vmul.f32 %v993, 1.0614054
    %v996 = vadd.f32 %v994, -1.4531521
    %v997 = vadd.f32 %v995, -1.4531521
    %v998 = vmul.f32 %v996, %v991
    %v999 = vmul.f32 %v997, %v993
    %v1000 = vadd.f32 %v998, 1.4214138
    %v1001 = vadd.f32 %v999, 1.4214138
    %v1002 = vmul.f32 %v1000, %v991
    %v1003 = vmul.f32 %v1001, %v993
    %v1004 = vadd.f32 %v1002, -0.28449672
    %v1005 = vadd.f32 %v1003, -0.28449672
    %v1006 = vmul.f32 %v1004, %v991
    %v1007 = vmul.f32 %v1005, %v993
    %v1008 = vadd.f32 %v1006, 0.2548296
    %v1009 = vadd.f32 %v1007, 0.2548296
    %v1010 = vmul.f32 %v1008, %v991
    %v1011 = vmul.f32 %v1009, %v993
    %v1012 = vsub.f32 0.0, %v984
    %v1013 = vsub.f32 0.0, %v985
    %v1014 = vmul.f32 %v1012, %v984
    %v1015 = vmul.f32 %v1013, %v985
    %v1016 = vmul.f32 %v1014, 1.442695
    %v1017 = vpow.pop %v1016
    %v1018 = vmul.f32 %v1015, 1.442695
    %v1019 = vpow.pop %v1018
    %v1020 = vmul.f32 %v1010, %v1017
    %v1021 = vmul.f32 %v1011, %v1019
    %v1022 = vsub.f32 1.0, %v1020
    %v1023 = vsub.f32 1.0, %v1021
    %v1024 = vmul.f32 %v982, %v1022
    %v1025 = vmul.f32 %v983, %v1023
    %v1026 = vadd.f32 %v1024, 1.0
    %v1027 = vadd.f32 %v1025, 1.0
    %v1028 = vmul.f32 %v976, %v1026
    %v1029 = vmul.f32 %v977, %v1027
    %v1030 = vld [vmem:[#allocation13] sm:$0xff]
    %v1031 = vld [vmem:[#allocation13 + $0x8] sm:$0xff]
    %v1032 = vld [vmem:[#allocation13 + $0x10] sm:$0xff]
    %v1033 = vld [vmem:[#allocation13 + $0x18] sm:$0xff]
    %v1034 = vld [vmem:[#allocation13 + $0x20] sm:$0xff]
    %v1035 = vld [vmem:[#allocation13 + $0x28] sm:$0xff]
    %v1036 = vld [vmem:[#allocation13 + $0x30] sm:$0xff]
    %v1037 = vld [vmem:[#allocation13 + $0x38] sm:$0xff]
    %v1038 = vld [vmem:[#allocation13 + $0x40] sm:$0xff]
    %v1039 = vld [vmem:[#allocation13 + $0x48] sm:$0xff]
    %v1040 = vld [vmem:[#allocation13 + $0x50] sm:$0xff]
    %v1041 = vld [vmem:[#allocation13 + $0x58] sm:$0xff]
    %v1042 = vld [vmem:[#allocation13 + $0x60] sm:$0xff]
    %v1043 = vld [vmem:[#allocation13 + $0x68] sm:$0xff]
    %v1044 = vld [vmem:[#allocation13 + $0x70] sm:$0xff]
    %v1045 = vld [vmem:[#allocation13 + $0x78] sm:$0xff]
    %v1046 = vld [vmem:[#allocation13 + $0x80] sm:$0xff]
    %v1047 = vld [vmem:[#allocation13 + $0x88] sm:$0xff]
    %v1048 = vld [vmem:[#allocation13 + $0x90] sm:$0xff]
    %v1049 = vld [vmem:[#allocation13 + $0x98] sm:$0xff]
    %v1050 = vld [vmem:[#allocation13 + $0xa0] sm:$0xff]
    %v1051 = vld [vmem:[#allocation13 + $0xa8] sm:$0xff]
    %v1052 = vld [vmem:[#allocation13 + $0xb0] sm:$0xff]
    %v1053 = vld [vmem:[#allocation13 + $0xb8] sm:$0xff]
    %v1054 = vld [vmem:[#allocation13 + $0xc0] sm:$0xff]
    %v1055 = vld [vmem:[#allocation13 + $0xc8] sm:$0xff]
    %v1056 = vld [vmem:[#allocation13 + $0xd0] sm:$0xff]
    %v1057 = vld [vmem:[#allocation13 + $0xd8] sm:$0xff]
    %v1058 = vld [vmem:[#allocation13 + $0xe0] sm:$0xff]
    %v1059 = vld [vmem:[#allocation13 + $0xe8] sm:$0xff]
    %v1060 = vld [vmem:[#allocation13 + $0xf0] sm:$0xff]
    %v1061 = vld [vmem:[#allocation13 + $0xf8] sm:$0xff]
    %v1062 = vld [vmem:[%s11] sm:$0x1]
    %v1064 = vlaneseq
    %v1065 = vshrl.u32 %v1064, 7
    %v1066 = vsub.s32 0, %v1065
    %v1067 = vrot.slane %v1062, %v1066
    %1069 = vmatprep.subr.mxu0 0.0
    %1070 = vmatpush1.msra.mxu0 %v1030
    %1071 = vmatprep.subr.mxu0 0.0
    %1072 = vmatpush1.msra.mxu0 %v1031
    %1073 = vmatprep.subr.mxu0 0.0
    %1074 = vmatpush1.msra.mxu0 %v1032
    %1075 = vmatprep.subr.mxu0 0.0
    %1076 = vmatpush1.msra.mxu0 %v1033
    %1077 = vmatprep.subr.mxu0 0.0
    %1078 = vmatpush1.msra.mxu0 %v1034
    %1079 = vmatprep.subr.mxu0 0.0
    %1080 = vmatpush1.msra.mxu0 %v1035
    %1081 = vmatprep.subr.mxu0 0.0
    %1082 = vmatpush1.msra.mxu0 %v1036
    %1083 = vmatprep.subr.mxu0 0.0
    %1084 = vmatpush1.msra.mxu0 %v1037
    %1085 = vmatprep.subr.mxu0 0.0
    %1086 = vmatpush1.msra.mxu0 %v1038
    %1087 = vmatprep.subr.mxu0 0.0
    %1088 = vmatpush1.msra.mxu0 %v1039
    %1089 = vmatprep.subr.mxu0 0.0
    %1090 = vmatpush1.msra.mxu0 %v1040
    %1091 = vmatprep.subr.mxu0 0.0
    %1092 = vmatpush1.msra.mxu0 %v1041
    %1093 = vmatprep.subr.mxu0 0.0
    %1094 = vmatpush1.msra.mxu0 %v1042
    %1095 = vmatprep.subr.mxu0 0.0
    %1096 = vmatpush1.msra.mxu0 %v1043
    %1097 = vmatprep.subr.mxu0 0.0
    %1098 = vmatpush1.msra.mxu0 %v1044
    %1099 = vmatprep.subr.mxu0 0.0
    %1100 = vmatpush1.msra.mxu0 %v1045
    %1101 = vmatprep.subr.mxu0 0.0
    %1102 = vmatpush1.msra.mxu0 %v1046
    %1103 = vmatprep.subr.mxu0 0.0
    %1104 = vmatpush1.msra.mxu0 %v1047
    %1105 = vmatprep.subr.mxu0 0.0
    %1106 = vmatpush1.msra.mxu0 %v1048
    %1107 = vmatprep.subr.mxu0 0.0
    %1108 = vmatpush1.msra.mxu0 %v1049
    %1109 = vmatprep.subr.mxu0 0.0
    %1110 = vmatpush1.msra.mxu0 %v1050
    %1111 = vmatprep.subr.mxu0 0.0
    %1112 = vmatpush1.msra.mxu0 %v1051
    %1113 = vmatprep.subr.mxu0 0.0
    %1114 = vmatpush1.msra.mxu0 %v1052
    %1115 = vmatprep.subr.mxu0 0.0
    %1116 = vmatpush1.msra.mxu0 %v1053
    %1117 = vmatprep.subr.mxu0 0.0
    %1118 = vmatpush1.msra.mxu0 %v1054
    %1119 = vmatprep.subr.mxu0 0.0
    %1120 = vmatpush1.msra.mxu0 %v1055
    %1121 = vmatprep.subr.mxu0 0.0
    %1122 = vmatpush1.msra.mxu0 %v1056
    %1123 = vmatprep.subr.mxu0 0.0
    %1124 = vmatpush1.msra.mxu0 %v1057
    %1125 = vmatprep.subr.mxu0 0.0
    %1126 = vmatpush1.msra.mxu0 %v1058
    %1127 = vmatprep.subr.mxu0 0.0
    %1128 = vmatpush1.msra.mxu0 %v1059
    %1129 = vmatprep.subr.mxu0 0.0
    %1130 = vmatpush1.msra.mxu0 %v1060
    %1131 = vmatprep.subr.mxu0 0.0
    %1132 = vmatpush1.msra.mxu0 %v1061
    %1133 = vmatprep.mubr.f32.mxu0 %v1029
    %1134 = vmatmul.mubr.f32.gmra.mrb[0].mxu0 %v1028
    %v1135 = vpop.f32.mrb[0].mxu0
    %v1136 = vadd.f32 %v1067, %v1135
    %v1137 = vpop.f32.mrb[0].mxu0
    %1138 = vdwg.mxu0
    %v1139 = vxor.u32 %v1136, 2147483648
    %v1140 = vmul.f32 %v1139, 1.442695
    %v1141 = vpow.pop %v1140
    %v1142 = vadd.f32 %v1141, 1.0
    %v1143 = vrcp.pop %v1142
    %v1144 = vmul.f32 1.0, %v1143
    %1145 = vst [vmem:[#allocation14] sm:$0xff] %v1144
    // Predicated region
    $region78: #{tpu_custom_call.1} parent=1 // pred_check
      _
    $region79: #{tpu_custom_call.1} parent=1 // pred_check_branch
      %1147 = sbr.rel (0) target = $region81
    $region80: #{tpu_custom_call.1} parent=1 // pred_region
      %s1149 = ssub.s32 128, 128
      %1150 = vsyncadd [#allocation4], %s1149
      %s1152 = sshll.u32 [#allocation14], 4
      %s1153 = int_to_ptr.vmem [resolvable:$true] %s1152
      %1155 = dma.vmem_to_hbm [thread:$0]  %s1153, 128, %s12, [#allocation4]
    $region81: #{tpu_custom_call.1} parent=1 // pred_fallthru
      _
    // Predicated region
    $region82: #{tpu_custom_call.1} parent=1 // pred_check
      _
    $region83: #{tpu_custom_call.1} parent=1 // pred_check_branch
      %1157 = sbr.rel (0) target = $region85
    $region84: #{tpu_custom_call.1} parent=1 // pred_region
      %1158 = dma.done [#allocation4], 128
    $region85: #{tpu_custom_call.1} parent=1 // pred_fallthru
      _
    %1159 = vsyncpa [#allocation3], 1
    %1160 = vsyncpa [#allocation6], 1
    %1161 = vsyncpa [#allocation9], 1
    %1162 = vsyncpa [#allocation12], 1
    %1163 = vsyncpa [#allocation4], 1

</llo_original>
